<compile_context>
chip_gen: v7x
topology: tpu7x:2x2x1
jax: 0.10.0
libtpu: 0.0.40
codegen_flags: <defaults>
</compile_context>

<pallas_src>
import functools

import jax
import jax.numpy as jnp
from jax import lax
from jax.experimental import pallas as pl
from jax.experimental.pallas import tpu as pltpu


def _round_up(x, m):
    return (x + m - 1) // m * m


def _pick_batch_tile(batch, c_in, c_out, l_in, l_out):
    """Largest divisor of `batch` that keeps the folded lane width moderate,
    the per-step blocks small in VMEM, and >= 2 parallel grid steps (v7x)."""
    best = 1
    for tb in range(1, batch + 1):
        if batch % tb:
            continue
        if tb * l_out > 1024:                 # folded lane width cap
            continue
        if batch >= 2 and batch // tb < 2:    # keep both v7x TensorCores busy
            continue
        vmem = 2 * 4 * (tb * c_in * l_in + c_out * tb * l_out)  # dbl-buffered io
        if vmem > 8 * 1024 * 1024:
            continue
        best = tb
    return best


def _make_kernel(*, batch_tile, c_in, c_pad, c_out, l_in, l_out, kernel_size,
                 dilation, padding):
    def kernel(len_ref, x_ref, w_ref, b_ref, o_ref, slab_ref):
        blk = pl.program_id(0)

        # Zero the im2col slab: covers conv edge padding, the zero-padded
        # channel rows, and stale data from the previous grid step.
        slab_ref[...] = jnp.zeros(slab_ref.shape, slab_ref.dtype)

        # Single-row position index; broadcast along sublanes inside jnp.where.
        pos = lax.broadcasted_iota(jnp.int32, (1, l_in), 1)

        for b in range(batch_tile):                      # static, small
            new_len = len_ref[blk * batch_tile + b]      # int32 scalar (SMEM)
            xb = x_ref[b]                                # (C_in, L) f32
            xm = jnp.where(pos < new_len, xb, 0.0)       # mask on ORIGINAL L axis

            # Scatter the K dilated taps into the slab. All slice bounds are
            # static; out-of-range tap positions (the conv zero padding) simply
            # stay zero, so no padded copy of x is ever made.
            for k in range(kernel_size):
                off = k * dilation - padding             # src col of output j=0
                src_lo = max(0, off)
                src_hi = min(l_in, off + l_out)
                n = src_hi - src_lo
                if n <= 0:
                    continue
                dst = b * l_out + (src_lo - off)
                slab_ref[k * c_pad:k * c_pad + c_in, dst:dst + n] = \
                    xm[:, src_lo:src_hi]

        # One fused MXU contraction over all taps/channels/batches:
        # (C_out, K*C_pad) x (K*C_pad, batch_tile*L_out), bf16 in, f32 acc.
        rhs = slab_ref[...].astype(jnp.bfloat16)
        acc = jnp.dot(w_ref[...], rhs, preferred_element_type=jnp.float32)
        o_ref[0] = (acc + b_ref[...]).astype(o_ref.dtype)

    return kernel


@functools.partial(jax.jit, static_argnames=("kernel_size", "stride", "padding",
                                             "dilation", "batch_tile"))
def masked_conv1d(x, length, weight, bias, *, kernel_size, stride=1, padding=0,
                  dilation=1, batch_tile=None):
    """x: (B, C_in, L) f32, length: (B,) int32, weight: (C_out, C_in, K),
    bias: (C_out,). Returns (y: (B, C_out, L_out), new_len: (B,) int32)."""
    assert stride == 1  # TODO(synk): stride > 1 needs strided lane slicing
    B, C_in, L = x.shape
    C_out = weight.shape[0]
    L_out = (L + 2 * padding - dilation * (kernel_size - 1) - 1) // stride + 1

    # New output lengths (same formula as the PyTorch floor-div on floats).
    new_len = ((length + 2 * padding - dilation * (kernel_size - 1) - 1 + stride)
               // stride).astype(jnp.int32)

    if batch_tile is None:
        batch_tile = _pick_batch_tile(B, C_in, C_out, L, L_out)
    assert B % batch_tile == 0
    nb = B // batch_tile

    # Fuse taps: weight (C_out, C_in, K) -> (C_out, K*C_pad), each tap's channel
    # block zero-padded to a multiple of 8 rows (sublane tile). bf16 operands.
    C_pad = _round_up(C_in, 8)
    w_p = jnp.pad(weight, ((0, 0), (0, C_pad - C_in), (0, 0)))      # tiny array
    w2 = jnp.transpose(w_p, (0, 2, 1)).reshape(C_out, kernel_size * C_pad)
    w2 = w2.astype(jnp.bfloat16)
    b2 = bias.reshape(C_out, 1).astype(jnp.float32)

    kernel = _make_kernel(batch_tile=batch_tile, c_in=C_in, c_pad=C_pad,
                          c_out=C_out, l_in=L, l_out=L_out,
                          kernel_size=kernel_size, dilation=dilation,
                          padding=padding)

    y_folded = pl.pallas_call(
        kernel,
        out_shape=jax.ShapeDtypeStruct((nb, C_out, batch_tile * L_out), x.dtype),
        grid_spec=pltpu.PrefetchScalarGridSpec(
            num_scalar_prefetch=1,                       # new_len -> SMEM
            grid=(nb,),
            in_specs=[
                pl.BlockSpec((batch_tile, C_in, L), lambda b, ln: (b, 0, 0)),
                pl.BlockSpec((C_out, kernel_size * C_pad), lambda b, ln: (0, 0)),
                pl.BlockSpec((C_out, 1), lambda b, ln: (0, 0)),
            ],
            out_specs=pl.BlockSpec((1, C_out, batch_tile * L_out),
                                   lambda b, ln: (b, 0, 0)),
            scratch_shapes=[
                pltpu.VMEM((kernel_size * C_pad, batch_tile * L_out),
                           jnp.float32),
            ],
        ),
        compiler_params=pltpu.CompilerParams(
            dimension_semantics=("parallel",),
            vmem_limit_bytes=32 * 1024 * 1024,   # within v7x 64 MiB physical
        ),
    )(new_len, x, w2, b2)

    # Un-fold the lane-packed batches (layout plumbing; free when batch_tile==1).
    y = y_folded.reshape(nb, C_out, batch_tile, L_out)
    y = jnp.transpose(y, (0, 2, 1, 3)).reshape(B, C_out, L_out)
    return y, new_len


def _reference(x, length, weight, bias, *, kernel_size, stride, padding,
               dilation, mxu_dtype=jnp.float32):
    new_len = ((length + 2 * padding - dilation * (kernel_size - 1) - 1 + stride)
               // stride).astype(jnp.int32)
    L = x.shape[2]
    mask = (jnp.arange(L)[None, :] < new_len[:, None]).astype(x.dtype)
    xm = x * mask[:, None, :]
    y = lax.conv_general_dilated(
        xm.astype(mxu_dtype), weight.astype(mxu_dtype),
        window_strides=(stride,), padding=[(padding, padding)],
        rhs_dilation=(dilation,),
        dimension_numbers=("NCH", "OIH", "NCH"),
        preferred_element_type=jnp.float32)
    return y + bias[None, :, None], new_len


if __name__ == "__main__":
    # module instantiation (synthetic, deterministic)
    in_channels, out_channels = 4, 8
    kernel_size, stride, padding, dilation = 3, 1, 1, 1

    B, L = 4, 16
    key = jax.random.PRNGKey(0)
    kx, kw, kb = jax.random.split(key, 3)

    x = jax.random.normal(kx, (B, in_channels, L), dtype=jnp.float32)
    length = jnp.array([16, 11, 7, 16], dtype=jnp.int32)

    bound = 1.0 / (in_channels * kernel_size) ** 0.5  # Conv1d default init range
    weight = jax.random.uniform(kw, (out_channels, in_channels, kernel_size),
                                minval=-bound, maxval=bound, dtype=jnp.float32)
    bias = jax.random.uniform(kb, (out_channels,), minval=-bound, maxval=bound,
                              dtype=jnp.float32)

    y, new_len = masked_conv1d(x, length, weight, bias,
                               kernel_size=kernel_size, stride=stride,
                               padding=padding, dilation=dilation)
    jax.block_until_ready((y, new_len))

    # Tight check against a reference using the same bf16 MXU operands
    # (validates masking / im2col / indexing exactly).
    y_ref_bf16, len_ref = _reference(x, length, weight, bias,
                                     kernel_size=kernel_size, stride=stride,
                                     padding=padding, dilation=dilation,
                                     mxu_dtype=jnp.bfloat16)
    assert jnp.allclose(y, y_ref_bf16, atol=1e-4, rtol=1e-4), \
        float(jnp.max(jnp.abs(y - y_ref_bf16)))

    # Loose check against the exact f32 module semantics (bf16 operand error).
    y_ref_f32, _ = _reference(x, length, weight, bias,
                              kernel_size=kernel_size, stride=stride,
                              padding=padding, dilation=dilation,
                              mxu_dtype=jnp.float32)
    assert jnp.allclose(y, y_ref_f32, atol=2e-2, rtol=2e-2), \
        float(jnp.max(jnp.abs(y - y_ref_f32)))

    assert jnp.array_equal(new_len, len_ref)

    print("KERNEL_OK")
</pallas_src>

<mosaic_0001>
module attributes {stable_mosaic.version = 11 : i64} {
  func.func @kernel(%arg0: i32, %arg1: memref<4xi32, #tpu.memory_space<smem>>, %arg2: memref<2x4x16xf32, #tpu.memory_space<vmem>>, %arg3: memref<8x24xbf16, #tpu.memory_space<vmem>>, %arg4: memref<8x1xf32, #tpu.memory_space<vmem>>, %arg5: memref<1x8x32xf32, #tpu.memory_space<vmem>>, %arg6: memref<24x32xf32, #tpu.memory_space<vmem>>) attributes {dimension_semantics = [#tpu.dimension_semantics<parallel>], iteration_bounds = array<i64: 2>, scalar_prefetch = 1 : i64, scratch_operands = 1 : i64, tpu.core_type = #tpu.core_type<tc>, window_params = [{transform_indices = @transform_0, window_bounds = array<i64: 2, 4, 16>}, {pipeline_mode = #tpu.pipeline_mode<synchronous>, transform_indices = @transform_1, window_bounds = array<i64: 8, 24>}, {pipeline_mode = #tpu.pipeline_mode<synchronous>, transform_indices = @transform_2, window_bounds = array<i64: 8, 1>}, {transform_indices = @transform_3, window_bounds = array<i64: 1, 8, 32>}]} {
    %cst = arith.constant 0.000000e+00 : f32
    %0 = vector.broadcast %cst : f32 to vector<24x32xf32>
    %c0 = arith.constant 0 : index
    %c0_0 = arith.constant 0 : index
    %1 = vector.load %arg6[%c0, %c0_0] : memref<24x32xf32, #tpu.memory_space<vmem>>, vector<24x32xf32>
    tpu.vector_store %arg6[%c0, %c0_0], %0 {strides = array<i32>} : memref<24x32xf32, #tpu.memory_space<vmem>>, vector<24x32xf32>,
    %2 = tpu.iota {dimensions = array<i32: 1>} : vector<1x16xi32>
    %c2_i32 = arith.constant 2 : i32
    %3 = arith.muli %arg0, %c2_i32 : i32
    %c0_i32 = arith.constant 0 : i32
    %4 = arith.addi %3, %c0_i32 : i32
    %5 = arith.index_cast %4 : i32 to index
    %6 = memref.load %arg1[%5] : memref<4xi32, #tpu.memory_space<smem>>
    %c0_1 = arith.constant 0 : index
    %c0_2 = arith.constant 0 : index
    %c0_3 = arith.constant 0 : index
    %7 = vector.load %arg2[%c0_1, %c0_2, %c0_3] : memref<2x4x16xf32, #tpu.memory_space<vmem>>, vector<1x4x16xf32>
    %8 = vector.shape_cast %7 : vector<1x4x16xf32> to vector<4x16xf32>
    %9 = vector.broadcast %6 : i32 to vector<1x16xi32>
    %10 = arith.cmpi slt, %2, %9 : vector<1x16xi32>
    %cst_4 = arith.constant 0.000000e+00 : f32
    %11 = vector.shape_cast %10 : vector<1x16xi1> to vector<1x16xi1>
    %12 = vector.broadcast %11 : vector<1x16xi1> to vector<4x16xi1>
    %13 = vector.broadcast %cst_4 : f32 to vector<4x16xf32>
    %14 = arith.select %12, %8, %13 : vector<4x16xi1>, vector<4x16xf32>
    %15 = vector.extract_strided_slice %14 {offsets = [0, 0], sizes = [4, 15], strides = [1, 1]} : vector<4x16xf32> to vector<4x15xf32>
    %c0_5 = arith.constant 0 : index
    %c1 = arith.constant 1 : index
    %16 = vector.load %arg6[%c0_5, %c1] : memref<24x32xf32, #tpu.memory_space<vmem>>, vector<4x15xf32>
    tpu.vector_store %arg6[%c0_5, %c1], %15 {strides = array<i32>} : memref<24x32xf32, #tpu.memory_space<vmem>>, vector<4x15xf32>,
    %c8 = arith.constant 8 : index
    %c0_6 = arith.constant 0 : index
    %17 = vector.load %arg6[%c8, %c0_6] : memref<24x32xf32, #tpu.memory_space<vmem>>, vector<4x16xf32>
    tpu.vector_store %arg6[%c8, %c0_6], %14 {strides = array<i32>} : memref<24x32xf32, #tpu.memory_space<vmem>>, vector<4x16xf32>,
    %18 = vector.extract_strided_slice %14 {offsets = [0, 1], sizes = [4, 15], strides = [1, 1]} : vector<4x16xf32> to vector<4x15xf32>
    %c16 = arith.constant 16 : index
    %c0_7 = arith.constant 0 : index
    %19 = vector.load %arg6[%c16, %c0_7] : memref<24x32xf32, #tpu.memory_space<vmem>>, vector<4x15xf32>
    tpu.vector_store %arg6[%c16, %c0_7], %18 {strides = array<i32>} : memref<24x32xf32, #tpu.memory_space<vmem>>, vector<4x15xf32>,
    %c2_i32_8 = arith.constant 2 : i32
    %20 = arith.muli %arg0, %c2_i32_8 : i32
    %c1_i32 = arith.constant 1 : i32
    %21 = arith.addi %20, %c1_i32 : i32
    %22 = arith.index_cast %21 : i32 to index
    %23 = memref.load %arg1[%22] : memref<4xi32, #tpu.memory_space<smem>>
    %c1_9 = arith.constant 1 : index
    %c0_10 = arith.constant 0 : index
    %c0_11 = arith.constant 0 : index
    %24 = vector.load %arg2[%c1_9, %c0_10, %c0_11] : memref<2x4x16xf32, #tpu.memory_space<vmem>>, vector<1x4x16xf32>
    %25 = vector.shape_cast %24 : vector<1x4x16xf32> to vector<4x16xf32>
    %26 = vector.broadcast %23 : i32 to vector<1x16xi32>
    %27 = arith.cmpi slt, %2, %26 : vector<1x16xi32>
    %cst_12 = arith.constant 0.000000e+00 : f32
    %28 = vector.shape_cast %27 : vector<1x16xi1> to vector<1x16xi1>
    %29 = vector.broadcast %28 : vector<1x16xi1> to vector<4x16xi1>
    %30 = vector.broadcast %cst_12 : f32 to vector<4x16xf32>
    %31 = arith.select %29, %25, %30 : vector<4x16xi1>, vector<4x16xf32>
    %32 = vector.extract_strided_slice %31 {offsets = [0, 0], sizes = [4, 15], strides = [1, 1]} : vector<4x16xf32> to vector<4x15xf32>
    %c0_13 = arith.constant 0 : index
    %c17 = arith.constant 17 : index
    %33 = vector.load %arg6[%c0_13, %c17] : memref<24x32xf32, #tpu.memory_space<vmem>>, vector<4x15xf32>
    tpu.vector_store %arg6[%c0_13, %c17], %32 {strides = array<i32>} : memref<24x32xf32, #tpu.memory_space<vmem>>, vector<4x15xf32>,
    %c8_14 = arith.constant 8 : index
    %c16_15 = arith.constant 16 : index
    %34 = vector.load %arg6[%c8_14, %c16_15] : memref<24x32xf32, #tpu.memory_space<vmem>>, vector<4x16xf32>
    tpu.vector_store %arg6[%c8_14, %c16_15], %31 {strides = array<i32>} : memref<24x32xf32, #tpu.memory_space<vmem>>, vector<4x16xf32>,
    %35 = vector.extract_strided_slice %31 {offsets = [0, 1], sizes = [4, 15], strides = [1, 1]} : vector<4x16xf32> to vector<4x15xf32>
    %c16_16 = arith.constant 16 : index
    %c16_17 = arith.constant 16 : index
    %36 = vector.load %arg6[%c16_16, %c16_17] : memref<24x32xf32, #tpu.memory_space<vmem>>, vector<4x15xf32>
    tpu.vector_store %arg6[%c16_16, %c16_17], %35 {strides = array<i32>} : memref<24x32xf32, #tpu.memory_space<vmem>>, vector<4x15xf32>,
    %c0_18 = arith.constant 0 : index
    %c0_19 = arith.constant 0 : index
    %37 = vector.load %arg6[%c0_18, %c0_19] : memref<24x32xf32, #tpu.memory_space<vmem>>, vector<24x32xf32>
    %38 = arith.truncf %37 : vector<24x32xf32> to vector<24x32xbf16>
    %c0_20 = arith.constant 0 : index
    %c0_21 = arith.constant 0 : index
    %39 = vector.load %arg3[%c0_20, %c0_21] : memref<8x24xbf16, #tpu.memory_space<vmem>>, vector<8x24xbf16>
    %cst_22 = arith.constant dense<0.000000e+00> : vector<8x32xf32>
    %40 = tpu.matmul %39, %38, %cst_22 {dimension_numbers = #tpu.dot_dimension_numbers<[1], [0], [0], [1], [0, 0, 1, 1], [], []>} : vector<8x24xbf16>, vector<24x32xbf16>, vector<8x32xf32> -> vector<8x32xf32>
    %c0_23 = arith.constant 0 : index
    %c0_24 = arith.constant 0 : index
    %41 = vector.load %arg4[%c0_23, %c0_24] : memref<8x1xf32, #tpu.memory_space<vmem>>, vector<8x1xf32>
    %42 = vector.broadcast %41 : vector<8x1xf32> to vector<8x32xf32>
    %43 = arith.addf %40, %42 : vector<8x32xf32>
    %c0_25 = arith.constant 0 : index
    %c0_26 = arith.constant 0 : index
    %c0_27 = arith.constant 0 : index
    %44 = vector.load %arg5[%c0_25, %c0_26, %c0_27] : memref<1x8x32xf32, #tpu.memory_space<vmem>>, vector<1x8x32xf32>
    %45 = vector.shape_cast %44 : vector<1x8x32xf32> to vector<8x32xf32>
    %46 = vector.shape_cast %43 : vector<8x32xf32> to vector<1x8x32xf32>
    tpu.vector_store %arg5[%c0_25, %c0_26, %c0_27], %46 {strides = array<i32>} : memref<1x8x32xf32, #tpu.memory_space<vmem>>, vector<1x8x32xf32>,
    return
  }
  func.func @transform_0(%arg0: i32, %arg1: memref<4xi32, #tpu.memory_space<smem>>) -> (i32, i32, i32) {
    %c0_i32 = arith.constant 0 : i32
    %c0_i32_0 = arith.constant 0 : i32
    %c0_i32_1 = arith.constant 0 : i32
    return %arg0, %c0_i32, %c0_i32_0 : i32, i32, i32
  }
  func.func @transform_1(%arg0: i32, %arg1: memref<4xi32, #tpu.memory_space<smem>>) -> (i32, i32) {
    %c0_i32 = arith.constant 0 : i32
    %c0_i32_0 = arith.constant 0 : i32
    %c0_i32_1 = arith.constant 0 : i32
    return %c0_i32, %c0_i32_0 : i32, i32
  }
  func.func @transform_2(%arg0: i32, %arg1: memref<4xi32, #tpu.memory_space<smem>>) -> (i32, i32) {
    %c0_i32 = arith.constant 0 : i32
    %c0_i32_0 = arith.constant 0 : i32
    %c0_i32_1 = arith.constant 0 : i32
    return %c0_i32, %c0_i32_0 : i32, i32
  }
  func.func @transform_3(%arg0: i32, %arg1: memref<4xi32, #tpu.memory_space<smem>>) -> (i32, i32, i32) {
    %c0_i32 = arith.constant 0 : i32
    %c0_i32_0 = arith.constant 0 : i32
    %c0_i32_1 = arith.constant 0 : i32
    return %arg0, %c0_i32, %c0_i32_0 : i32, i32, i32
  }
}

</mosaic_0001>

<llo_original>
// kernel: masked_conv1d.1
$region0: #{masked_conv1d.1}
  #allocation0 [shape = 'u32[]', space=smem, size = 0x4, offset = 0x4, fixed_abs, tag = 'smem constant byte address 0x4 - core index']
  #allocation1 [shape = 'u32[144,128]{1,0:T(1,128)}', space=vmem, size = 0x12000, scoped, tag = 'internal scratch']
  #allocation2 [shape = 'f32[24,32]{1,0:T(8,128)}', space=vmem, size = 0x3000, scoped, tag = 'scratch operand']
  #allocation3 [shape = 's32[1]{0}', space=sflag, size = 0x4, scoped, tag = 'scoped memory for masked_conv1d.1']
  #allocation4 [shape = 'u8[512]{0}', space=smem, size = 0x200, scoped, tag = 'prefetched SMEM operand 0']
  %s0 = inlined_call_operand.vmem [shape: s32[4], index: 0, kind: input, shape index: {}]
  %s1 = inlined_call_operand.vmem [shape: f32[4,4,16], index: 1, kind: input, shape index: {}]
  %s2 = inlined_call_operand.vmem [shape: bf16[8,24], index: 2, kind: input, shape index: {}]
  %s3 = inlined_call_operand.vmem [shape: f32[8,1], index: 3, kind: input, shape index: {}]
  %s4 = inlined_call_operand.vmem [shape: f32[2,8,32], index: 4, kind: output, shape index: {}]
  %s5 = sld [smem:[#allocation0]]
  $region45: #{masked_conv1d.1} parent=0
    _
  %s7 = ssub.s32 1, %s5
  %s8 = scalar_select 0, %s7, %s5
  %s9 = sshll.u32 %s0, 4
  %s10 = int_to_ptr.vmem [resolvable:$true] %s9
  %12 = dma.vmem_to_smem %s10, 16, [#allocation4], [#allocation3]
  %13 = dma.done [#allocation3], 16
  %14 = sfence
  loop: start=0, step=1, limit=4
  $region2: #{masked_conv1d.1} parent=0 // loop_pre_header
    _
  $region3: #{masked_conv1d.1} parent=0 // loop_header
    %s16 = sphi 0, %s20
    %p17 = scmp.ge.s32.totalorder %s16, 4
    %s26 = sphi 0, %s28
    %s29 = sphi 0, %s26
    %s30 = sphi 0, %s29
    %s46 = sphi 0, %s30
    %s50 = sphi 0, %s50
    %s52 = sphi 0, %s50
    %s53 = sphi 0, %s52
    %s67 = sphi 0, %s53
    %s71 = sphi 0, %s71
    %s73 = sphi 0, %s71
    %s74 = sphi 0, %s73
    %s88 = sphi 0, %s74
    %s94 = sphi 0, %s96
    %s97 = sphi 0, %s94
    %s98 = sphi 0, %s97
    %s114 = sphi 0, %s98
  $region4: #{masked_conv1d.1} parent=0 // loop_header_branch
    %19 = sbr.rel (%p17) target = $region8
  $region5: #{masked_conv1d.1} parent=0 // loop_body
    %s21 = ssub.s32 %s16, 1
    %s22 = ssub.s32 %s16, 2
    %s23 = sadd.s32 %s16, 1
    %s24 = ssub.s32 %s16, %s23
    %p25 = scmp.eq.s32.totalorder %s24, 0
    %s27 = sadd.s32 %s26, 1
    %s28 = scalar_select %p25, %s26, %s27
    %p31 = pneg %p25
    %p32 = scmp.eq.s32.totalorder %s16, 1
    %p33 = por %p31, %p32
    %p34 = scmp.ne.s32.totalorder %s26, %s29
    %p35 = scmp.eq.s32.totalorder %s16, 0
    %p36 = por %p34, %p35
    %p37 = scmp.ne.s32.totalorder %s26, %s29
    %p38 = scmp.eq.s32.totalorder %s21, 1
    %p39 = por %p37, %p38
    %p40 = scmp.ne.s32.totalorder %s29, %s30
    %p41 = scmp.eq.s32.totalorder %s21, 0
    %p42 = por %p40, %p41
    %p43 = scmp.ne.s32.totalorder %s29, %s30
    %p44 = scmp.eq.s32.totalorder %s22, 1
    %p45 = por %p43, %p44
    %p47 = scmp.ne.s32.totalorder %s30, %s46
    %p48 = scmp.eq.s32.totalorder %s22, 0
    %p49 = por %p47, %p48
    %s51 = sadd.s32 %s50, 1
    %p54 = scmp.eq.s32.totalorder %s16, 1
    %p55 = scmp.ne.s32.totalorder %s50, %s52
    %p56 = scmp.eq.s32.totalorder %s16, 0
    %p57 = por %p55, %p56
    %p58 = scmp.ne.s32.totalorder %s50, %s52
    %p59 = scmp.eq.s32.totalorder %s21, 1
    %p60 = por %p58, %p59
    %p61 = scmp.ne.s32.totalorder %s52, %s53
    %p62 = scmp.eq.s32.totalorder %s21, 0
    %p63 = por %p61, %p62
    %p64 = scmp.ne.s32.totalorder %s52, %s53
    %p65 = scmp.eq.s32.totalorder %s22, 1
    %p66 = por %p64, %p65
    %p68 = scmp.ne.s32.totalorder %s53, %s67
    %p69 = scmp.eq.s32.totalorder %s22, 0
    %p70 = por %p68, %p69
    %s72 = sadd.s32 %s71, 1
    %p75 = scmp.eq.s32.totalorder %s16, 1
    %p76 = scmp.ne.s32.totalorder %s71, %s73
    %p77 = scmp.eq.s32.totalorder %s16, 0
    %p78 = por %p76, %p77
    %p79 = scmp.ne.s32.totalorder %s71, %s73
    %p80 = scmp.eq.s32.totalorder %s21, 1
    %p81 = por %p79, %p80
    %p82 = scmp.ne.s32.totalorder %s73, %s74
    %p83 = scmp.eq.s32.totalorder %s21, 0
    %p84 = por %p82, %p83
    %p85 = scmp.ne.s32.totalorder %s73, %s74
    %p86 = scmp.eq.s32.totalorder %s22, 1
    %p87 = por %p85, %p86
    %p89 = scmp.ne.s32.totalorder %s74, %s88
    %p90 = scmp.eq.s32.totalorder %s22, 0
    %p91 = por %p89, %p90
    %s92 = ssub.s32 %s16, %s23
    %p93 = scmp.eq.s32.totalorder %s92, 0
    %s95 = sadd.s32 %s94, 1
    %s96 = scalar_select %p93, %s94, %s95
    %p99 = pneg %p93
    %p100 = scmp.eq.s32.totalorder %s16, 1
    %p101 = por %p99, %p100
    %p102 = scmp.ne.s32.totalorder %s94, %s97
    %p103 = scmp.eq.s32.totalorder %s16, 0
    %p104 = por %p102, %p103
    %p105 = scmp.ne.s32.totalorder %s94, %s97
    %p106 = scmp.eq.s32.totalorder %s21, 1
    %p107 = por %p105, %p106
    %p108 = scmp.ne.s32.totalorder %s97, %s98
    %p109 = scmp.eq.s32.totalorder %s21, 0
    %p110 = por %p108, %p109
    %p111 = scmp.ne.s32.totalorder %s97, %s98
    %p112 = scmp.eq.s32.totalorder %s22, 1
    %p113 = por %p111, %p112
    %p115 = scmp.ne.s32.totalorder %s98, %s114
    %p116 = scmp.eq.s32.totalorder %s22, 0
    %p117 = por %p115, %p116
    %p118 = scmp.le.s32.totalorder 1, %s16
    %p119 = scmp.lt.s32.totalorder %s16, 3
    %p120 = pnand %p118, %p119
    %p121 = pneg %p120
    // Predicated region
    $region9: #{masked_conv1d.1} parent=5 // pred_check
      _
    $region10: #{masked_conv1d.1} parent=5 // pred_check_branch
      %123 = sbr.rel (%p120) target = $region12
    $region11: #{masked_conv1d.1} parent=5 // pred_region
      %s124 = ssub.s32 %s16, 1
      // Predicated region
      $region13: #{masked_conv1d.1} parent=11 // pred_check
        %p125 = pneg %p63
      $region14: #{masked_conv1d.1} parent=11 // pred_check_branch
        %127 = sbr.rel (%p125) target = $region16
      $region15: #{masked_conv1d.1} parent=11 // pred_region
        _
      $region16: #{masked_conv1d.1} parent=11 // pred_fallthru
        _
      // Predicated region
      $region17: #{masked_conv1d.1} parent=11 // pred_check
        %p128 = pneg %p84
      $region18: #{masked_conv1d.1} parent=11 // pred_check_branch
        %130 = sbr.rel (%p128) target = $region20
      $region19: #{masked_conv1d.1} parent=11 // pred_region
        _
      $region20: #{masked_conv1d.1} parent=11 // pred_fallthru
        _
    $region12: #{masked_conv1d.1} parent=5 // pred_fallthru
      _
    %p131 = scmp.lt.s32.totalorder %s16, 2
    // Predicated region
    $region21: #{masked_conv1d.1} parent=5 // pred_check
      %p132 = pneg %p131
    $region22: #{masked_conv1d.1} parent=5 // pred_check_branch
      %134 = sbr.rel (%p132) target = $region24
    $region23: #{masked_conv1d.1} parent=5 // pred_region
      // Predicated region
      $region25: #{masked_conv1d.1} parent=23 // pred_check
        %p135 = pneg %p36
      $region26: #{masked_conv1d.1} parent=23 // pred_check_branch
        %137 = sbr.rel (%p135) target = $region28
      $region27: #{masked_conv1d.1} parent=23 // pred_region
        %s138 = smul.u32 2, %s16
        %p139 = scmp.lt.s32.totalorder %s138, 3
        %s140 = scalar_select %p139, %s138, 3
        %s141 = smul.addr %s140, 4
        %s142 = scalar_lea.vmem %s1, %s141
        %s143 = smul.u32 2, %s16
      $region28: #{masked_conv1d.1} parent=23 // pred_fallthru
        _
    $region24: #{masked_conv1d.1} parent=5 // pred_fallthru
      _
    %p144 = scmp.le.s32.totalorder 1, %s16
    %p145 = scmp.lt.s32.totalorder %s16, 3
    %p146 = pnand %p144, %p145
    %p147 = pneg %p146
    // Predicated region
    $region29: #{masked_conv1d.1} parent=5 // pred_check
      _
    $region30: #{masked_conv1d.1} parent=5 // pred_check_branch
      %149 = sbr.rel (%p146) target = $region32
    $region31: #{masked_conv1d.1} parent=5 // pred_region
      %s150 = ssub.s32 %s16, 1
      %s151 = smul.u32 2, %s21
      %p152 = scmp.lt.s32.totalorder %s151, 3
      %s153 = scalar_select %p152, %s151, 3
      %s154 = smul.addr %s153, 4
      %s155 = scalar_lea.vmem %s1, %s154
      %p156 = pneg %p42
      %p157 = pneg %p39
      %p158 = pneg %p63
      %p159 = pneg %p60
      %p160 = pneg %p84
      %p161 = pneg %p81
      %p162 = pneg %p110
      %p163 = pneg %p107
      %p164 = scmp.lt.s32.totalorder %s21, 1
      %s165 = scalar_select %p164, %s21, 1
      %s166 = smul.addr %s165, 8
      %s167 = scalar_lea.vmem %s4, %s166
      %s168 = smul.u32 2, %s21
      %p169 = scmp.lt.s32.totalorder %s168, 3
      %s170 = scalar_select %p169, %s168, 3
      %s171 = smul.addr %s170, 4
      %s172 = scalar_lea.vmem %s1, %s171
      %s173 = smul.u32 2, %s21
      %p174 = scmp.lt.s32.totalorder %s21, 1
      %s175 = scalar_select %p174, %s21, 1
      %s176 = smul.addr %s175, 8
      %s177 = scalar_lea.vmem %s4, %s176
      %vm179 = vcmask 261120
      %180 = vst.msk [vmem:[#allocation2] sm:$0xff] %vm179, 0.0
      %181 = vst.msk [vmem:[#allocation2 + $0x8] sm:$0xff] %vm179, 0.0
      %182 = vst.msk [vmem:[#allocation2 + $0x10] sm:$0xff] %vm179, 0.0
      %v183 = vlaneseq
      %v184 = vand.u32 %v183, 127
      %s185 = smul.u32 %s21, 2
      %s186 = sld [smem:[#allocation4 + %s185]]
      %v187 = vld [vmem:[%s172] sm:$0xf]
      %v188 = vstv %s186
      %vm189 = vcmp.lt.s32.totalorder %v184, %v188
      %v190 = vsel %vm189, 1, 0
      %vm191 = vcmp.eq.s32.totalorder %v190, 1
      %v192 = vsel %vm191, %v187, 0.0
      %194 = vrot.lane.b32.xlu0 %v192, 1
      %v195 = vpop.permute.xlu0 %194
      %vm197 = vcmask 125960
      %198 = vst.msk [vmem:[#allocation2] sm:$0xf] %vm197, %v195
      %vm199 = vcmask 125952
      %200 = vst.msk [vmem:[#allocation2 + $0x8] sm:$0xf] %vm199, %v192
      %201 = vrot.lane.b32.xlu0 %v192, 127
      %v202 = vpop.permute.xlu0 %201
      %vm204 = vcmask 117760
      %205 = vst.msk [vmem:[#allocation2 + $0x10] sm:$0xf] %vm204, %v202
      %s206 = sadd.s32 %s185, 1
      %s207 = sld [smem:[#allocation4 + %s206]]
      %s208 = scalar_lea.vmem %s172, 4
      %v209 = vld [vmem:[%s208] sm:$0xf]
      %v210 = vstv %s207
      %vm211 = vcmp.lt.s32.totalorder %v184, %v210
      %v212 = vsel %vm211, 1, 0
      %vm213 = vcmp.eq.s32.totalorder %v212, 1
      %v214 = vsel %vm213, %v209, 0.0
      %216 = vrot.lane.b32.xlu0 %v214, 17
      %v217 = vpop.permute.xlu0 %216
      %vm219 = vcmask 257160
      %220 = vst.msk [vmem:[#allocation2] sm:$0xf] %vm219, %v217
      %221 = vrot.lane.b32.xlu0 %v214, 16
      %v222 = vpop.permute.xlu0 %221
      %vm224 = vcmask 257152
      %225 = vst.msk [vmem:[#allocation2 + $0x8] sm:$0xf] %vm224, %v222
      %226 = vrot.lane.b32.xlu0 %v214, 15
      %v227 = vpop.permute.xlu0 %226
      %vm229 = vcmask 248960
      %230 = vst.msk [vmem:[#allocation2 + $0x10] sm:$0xf] %vm229, %v227
      %v231 = vld [vmem:[#allocation2] sm:$0xff]
      %v232 = vld [vmem:[#allocation2 + $0x8] sm:$0xff]
      %v233 = vld [vmem:[#allocation2 + $0x10] sm:$0xff]
      %v234 = vpack.c.bf16 %v232, %v231
      %v235 = vpack.c.bf16 %v233, %v233
      %v236 = vld [vmem:[%s2] sm:$0xf]
      %v237 = vld [vmem:[%s3] sm:$0xff]
      %239 = vset.pattern.permute.xlu0 0
      %240 = vperm.xlu0 %239, %v237
      %v241 = vpop.permute.xlu0 %240
      %vm243 = vcmask 195584
      %v245 = vsel %vm243, %v236, 0
      %vm247 = vcmask 1043456
      %v249 = vsel %vm247, %v235, 0
      %251 = vmatprep.subr.bf16.mxu0 0
      %252 = vmatpush1.bf16.msra.mxu0 %v234
      %253 = vmatprep.subr.bf16.mxu0 0
      %254 = vmatpush1.bf16.msra.mxu0 %v249
      %255 = vmatprep.subr.bf16.mxu0 0
      %256 = vmatpush1.bf16.msra.mxu0 0
      %257 = vmatprep.subr.bf16.mxu0 0
      %258 = vmatpush1.bf16.msra.mxu0 0
      %259 = vmatprep.subr.bf16.mxu0 0
      %260 = vmatpush1.bf16.msra.mxu0 0
      %261 = vmatprep.subr.bf16.mxu0 0
      %262 = vmatpush1.bf16.msra.mxu0 0
      %263 = vmatprep.subr.bf16.mxu0 0
      %264 = vmatpush1.bf16.msra.mxu0 0
      %265 = vmatprep.subr.bf16.mxu0 0
      %266 = vmatpush1.bf16.msra.mxu0 0
      %267 = vmatprep.subr.bf16.mxu0 0
      %268 = vmatpush1.bf16.msra.mxu0 0
      %269 = vmatprep.subr.bf16.mxu0 0
      %270 = vmatpush1.bf16.msra.mxu0 0
      %271 = vmatprep.subr.bf16.mxu0 0
      %272 = vmatpush1.bf16.msra.mxu0 0
      %273 = vmatprep.subr.bf16.mxu0 0
      %274 = vmatpush1.bf16.msra.mxu0 0
      %275 = vmatprep.subr.bf16.mxu0 0
      %276 = vmatpush1.bf16.msra.mxu0 0
      %277 = vmatprep.subr.bf16.mxu0 0
      %278 = vmatpush1.bf16.msra.mxu0 0
      %279 = vmatprep.subr.bf16.mxu0 0
      %280 = vmatpush1.bf16.msra.mxu0 0
      %281 = vmatprep.subr.bf16.mxu0 0
      %282 = vmatpush1.bf16.msra.mxu0 0
      %283 = vmatprep.mubr.bf16.mxu0 0
      %284 = vmatmul.mubr.bf16.gmra.mrb[0].mxu0 %v245
      %v285 = vpop.f32.mrb[0].mxu0
      %v286 = vadd.f32 %v241, %v285
      %v287 = vpop.f32.mrb[0].mxu0
      %v288 = vpop.f32.mrb[0].mxu0
      %v289 = vpop.f32.mrb[0].mxu0
      %290 = vdwg.mxu0
      %291 = vst.msk [vmem:[%s177] sm:$0xff] %vm179, %v286
      %p292 = scmp.lt.s32.totalorder %s21, 1
      %s293 = scalar_select %p292, %s21, 1
      %s294 = smul.addr %s293, 8
      %s295 = scalar_lea.vmem %s4, %s294
      // Predicated region
      $region33: #{masked_conv1d.1} parent=31 // pred_check
        %p296 = pneg %p107
      $region34: #{masked_conv1d.1} parent=31 // pred_check_branch
        %298 = sbr.rel (%p296) target = $region36
      $region35: #{masked_conv1d.1} parent=31 // pred_region
        _
      $region36: #{masked_conv1d.1} parent=31 // pred_fallthru
        _
    $region32: #{masked_conv1d.1} parent=5 // pred_fallthru
      _
    %p299 = scmp.le.s32.totalorder 2, %s16
    // Predicated region
    $region37: #{masked_conv1d.1} parent=5 // pred_check
      %p300 = pneg %p299
    $region38: #{masked_conv1d.1} parent=5 // pred_check_branch
      %302 = sbr.rel (%p300) target = $region40
    $region39: #{masked_conv1d.1} parent=5 // pred_region
      %s303 = ssub.s32 %s16, 2
      // Predicated region
      $region41: #{masked_conv1d.1} parent=39 // pred_check
        %p304 = pneg %p113
      $region42: #{masked_conv1d.1} parent=39 // pred_check_branch
        %306 = sbr.rel (%p304) target = $region44
      $region43: #{masked_conv1d.1} parent=39 // pred_region
        %p307 = scmp.lt.s32.totalorder %s22, 1
        %s308 = scalar_select %p307, %s22, 1
        %s309 = smul.addr %s308, 8
        %s310 = scalar_lea.vmem %s4, %s309
      $region44: #{masked_conv1d.1} parent=39 // pred_fallthru
        _
    $region40: #{masked_conv1d.1} parent=5 // pred_fallthru
      _
  $region6: #{masked_conv1d.1} parent=0 // loop_footer
    %s20 = sadd.s32 1, %s16
  $region7: #{masked_conv1d.1} parent=0 // loop_footer_branch
    %15 = sbr.rel target = $region3
  $region8: #{masked_conv1d.1} parent=0 // loop_exit
    _

</llo_original>
